<compile_context>
chip_gen: v5e
topology: v5e:2x2
jax: 0.10.0
libtpu: 0.0.40
codegen_flags: <defaults>
</compile_context>

<pallas_src>
import functools

import jax
import jax.numpy as jnp
from jax.experimental import pallas as pl
from jax.experimental.pallas import tpu as pltpu

LN_EPS = 1e-6        # norm_layer = partial(nn.LayerNorm, eps=1e-6)
NEG_INF = -1e30      # additive mask value for padded key columns


# --------------------------------------------------------------------------
# In-kernel helpers (all f32 elementwise math)
# --------------------------------------------------------------------------

def _ln_rows(x, g, b):
    """Row-wise LayerNorm in f32; g/b are (1, C)."""
    mean = jnp.mean(x, axis=-1, keepdims=True)
    var = jnp.mean(jnp.square(x - mean), axis=-1, keepdims=True)
    return (x - mean) * jax.lax.rsqrt(var + LN_EPS) * g + b


def _gelu_exact(x):
    # nn.GELU default: exact erf formulation.
    return 0.5 * x * (1.0 + jax.lax.erf(x * 0.7071067811865476))


# --------------------------------------------------------------------------
# Kernels
# --------------------------------------------------------------------------

def _vit_embed_kernel(xp_ref, tokb_ref, pw_ref, norm_ref, out_ref, *,
                      num_patches, global_pool):
    """Patch-embed matmul + (cls/pos folded into tokb) + final LayerNorm.

    One grid step per image (batch axis is 'parallel').
      xp_ref:   (1, Np, patch_dim) bf16  (row 0 zeros -> cls slot, pad rows 0)
      tokb_ref: (Np, C)            f32   (row0: cls+pos0; i: patch_b+pos_i; pad 0)
      pw_ref:   (patch_dim, C)     bf16
      norm_ref: (2, C)             f32   (gamma, beta)
    """
    x = jnp.dot(xp_ref[0], pw_ref[...],
                preferred_element_type=jnp.float32) + tokb_ref[...]      # (Np, C)
    npar = norm_ref[...]
    ng, nb = npar[0:1], npar[1:2]
    if global_pool:
        # masked mean over patch tokens (cls row 0 and pad rows excluded),
        # single reduction -- no unaligned per-batch slices, no concat.
        row = jax.lax.broadcasted_iota(jnp.int32, x.shape, 0)
        w = jnp.where((row >= 1) & (row <= num_patches), 1.0 / num_patches, 0.0)
        pooled = jnp.sum(x * w, axis=0, keepdims=True)                   # (1, C)
        out_ref[0] = jnp.broadcast_to(_ln_rows(pooled, ng, nb),
                                      out_ref.shape[1:]).astype(out_ref.dtype)
    else:
        out_ref[0] = _ln_rows(x, ng, nb).astype(out_ref.dtype)


def _vit_blocks_kernel(xp_ref, tokb_ref, pw_ref, qkvw_ref, wo_ref, w1_ref,
                       w2_ref, bias_ref, norm_ref, out_ref, x_ref, *,
                       num_heads, head_dim, mlp_hidden, seq):
    """Fused embed -> `depth` transformer blocks -> final LayerNorm.

    Grid = (batch, depth): batch 'parallel', depth 'arbitrary'.  The activation
    x lives in a VMEM scratch (x_ref) carried across the depth axis; per-block
    weights are streamed (one block per grid step, double-buffered by Pallas).

      xp_ref:   (1, Np, patch_dim) bf16       (per image)
      tokb_ref: (Np, C)            f32
      pw_ref:   (patch_dim, C)     bf16
      qkvw_ref: (1, C, 3C)         bf16       (q columns pre-scaled by hd^-0.5)
      wo_ref:   (1, C, C)          bf16
      w1_ref:   (1, C, Dh)         bf16
      w2_ref:   (1, Dh, C)         bf16
      bias_ref: (1, 8, W)          f32        rows: ln1_g, ln1_b, ln2_g, ln2_b,
                                              bo, b2, [bq*s|bk|bv], b1
      norm_ref: (2, C)             f32        final norm (gamma, beta)
      out_ref:  (1, 2, Np, C)      f32        [0]=blocks feature, [1]=init feature
      x_ref:    (Np, C)            f32 VMEM scratch (carried activation)
    """
    d = pl.program_id(1)
    H, hd = num_heads, head_dim
    C = H * hd
    Np = x_ref.shape[0]

    npar = norm_ref[...]
    ng, nb = npar[0:1], npar[1:2]

    # ---- depth step 0: patch-embed + cls/pos, emit the "init" feature ----
    @pl.when(d == 0)
    def _():
        x0 = jnp.dot(xp_ref[0], pw_ref[...],
                     preferred_element_type=jnp.float32) + tokb_ref[...]
        x_ref[...] = x0
        out_ref[0, 1] = _ln_rows(x0, ng, nb).astype(out_ref.dtype)

    # ---- one transformer block (weights for block `d` streamed in) ----
    x = x_ref[...]                                               # (Np, C) f32
    vec = bias_ref[0]                                            # (8, W) f32
    ln1g, ln1b = vec[0:1, :C], vec[1:2, :C]
    ln2g, ln2b = vec[2:3, :C], vec[3:4, :C]
    bo, b2 = vec[4:5, :C], vec[5:6, :C]
    qkvb = vec[6:7, :3 * C]
    b1 = vec[7:8, :mlp_hidden]

    # additive key-padding mask: padded key columns -> -inf before softmax.
    col = jax.lax.broadcasted_iota(jnp.int32, (1, Np), 1)
    key_mask = jnp.where(col < seq, 0.0, NEG_INF)

    # -- self-attention branch (pre-LN); scale already folded into q weights --
    h = _ln_rows(x, ln1g, ln1b)
    qkv = jnp.dot(h.astype(jnp.bfloat16), qkvw_ref[0],
                  preferred_element_type=jnp.float32) + qkvb     # (Np, 3C)
    wo = wo_ref[0]                                               # (C, C) bf16
    attn = jnp.broadcast_to(bo, (Np, C))                         # start from proj bias
    for hh in range(H):                                          # static unroll
        lo = hh * hd
        qh = qkv[:, lo:lo + hd].astype(jnp.bfloat16)             # (Np, hd)
        kh = qkv[:, C + lo:C + lo + hd].astype(jnp.bfloat16)
        vh = qkv[:, 2 * C + lo:2 * C + lo + hd].astype(jnp.bfloat16)
        s = jax.lax.dot_general(qh, kh, (((1,), (1,)), ((), ())),
                                preferred_element_type=jnp.float32)   # q @ k^T
        s = s + key_mask
        s = s - jnp.max(s, axis=-1, keepdims=True)
        p = jnp.exp(s)
        p = p * pl.reciprocal(jnp.sum(p, axis=-1, keepdims=True), approx=True)
        oh = jnp.dot(p.astype(jnp.bfloat16), vh,
                     preferred_element_type=jnp.float32)         # (Np, hd)
        # fold the per-head output projection -> no concat of head outputs.
        attn = attn + jnp.dot(oh.astype(jnp.bfloat16), wo[lo:lo + hd, :],
                              preferred_element_type=jnp.float32)
    x = x + attn                                                 # residual

    # -- MLP branch (pre-LN) --
    h2 = _ln_rows(x, ln2g, ln2b)
    m = jnp.dot(h2.astype(jnp.bfloat16), w1_ref[0],
                preferred_element_type=jnp.float32) + b1
    m = _gelu_exact(m)
    y = jnp.dot(m.astype(jnp.bfloat16), w2_ref[0],
                preferred_element_type=jnp.float32) + b2
    x = x + y                                                    # residual
    x_ref[...] = x

    # ---- last block: emit the "blocks" feature ----
    @pl.when(d == pl.num_programs(1) - 1)
    def _():
        out_ref[0, 0] = _ln_rows(x, ng, nb).astype(out_ref.dtype)


# --------------------------------------------------------------------------
# Model (parameter container + forward, mirroring the PyTorch VisionTransformer)
# --------------------------------------------------------------------------

class VisionTransformerPallas:
    def __init__(self, key, img_size=16, patch_size=4, in_chans=3,
                 embed_dim=32, depth=2, num_heads=4, mlp_ratio=4.0,
                 global_pool=False):
        assert embed_dim % num_heads == 0
        self.img_size = img_size
        self.patch_size = patch_size
        self.in_chans = in_chans
        self.embed_dim = embed_dim
        self.depth = depth
        self.num_heads = num_heads
        self.head_dim = embed_dim // num_heads
        self.global_pool = global_pool
        self.mlp_hidden = int(embed_dim * mlp_ratio)
        self.num_patches = (img_size // patch_size) ** 2
        self.seq = self.num_patches + 1                 # cls + patches
        self.seq_pad = ((self.seq + 7) // 8) * 8        # sublane-aligned tokens

        def nrm(k, shape, s=0.05):
            return (s * jax.random.normal(k, shape)).astype(jnp.float32)

        keys = iter(jax.random.split(key, 4 + depth * 12))

        patch_dim = in_chans * patch_size * patch_size
        # Conv weight (D, C, p, p) stored pre-flattened/transposed as (C*p*p, D).
        self.patch_w = nrm(next(keys), (patch_dim, embed_dim))
        self.patch_b = nrm(next(keys), (embed_dim,))
        self.cls_token = nrm(next(keys), (1, 1, embed_dim), s=0.02)
        self.pos_embed = nrm(next(keys), (1, self.seq, embed_dim), s=0.02)

        self.blocks = []
        for _ in range(depth):
            blk = {
                "ln1_g": jnp.ones((embed_dim,), jnp.float32),
                "ln1_b": jnp.zeros((embed_dim,), jnp.float32),
                # Linear weights stored as (in, out) == torch W.T
                "wq": nrm(next(keys), (embed_dim, embed_dim)),
                "bq": nrm(next(keys), (embed_dim,)),
                "wk": nrm(next(keys), (embed_dim, embed_dim)),
                "bk": nrm(next(keys), (embed_dim,)),
                "wv": nrm(next(keys), (embed_dim, embed_dim)),
                "bv": nrm(next(keys), (embed_dim,)),
                "wo": nrm(next(keys), (embed_dim, embed_dim)),
                "bo": nrm(next(keys), (embed_dim,)),
                "ln2_g": jnp.ones((embed_dim,), jnp.float32),
                "ln2_b": jnp.zeros((embed_dim,), jnp.float32),
                "w1": nrm(next(keys), (embed_dim, self.mlp_hidden)),
                "b1": nrm(next(keys), (self.mlp_hidden,)),
                "w2": nrm(next(keys), (self.mlp_hidden, embed_dim)),
                "b2": nrm(next(keys), (embed_dim,)),
            }
            self.blocks.append(blk)

        self.norm_g = jnp.ones((embed_dim,), jnp.float32)
        self.norm_b = jnp.zeros((embed_dim,), jnp.float32)
        if global_pool:
            self.fc_norm_g = jnp.ones((embed_dim,), jnp.float32)
            self.fc_norm_b = jnp.zeros((embed_dim,), jnp.float32)

        self._pack_params()

    # ---------------- parameter packing (done once at init) ----------------
    def _pack_params(self):
        C = self.embed_dim
        Dh = self.mlp_hidden
        scale = self.head_dim ** (-0.5)

        # one f32 lane-padded bias slab per block (8 rows x W lanes)
        W = max(3 * C, Dh, C)
        W = ((W + 127) // 128) * 128
        self.bias_w = W

        def padrow(v):
            v = v.astype(jnp.float32).reshape(-1)
            return jnp.pad(v, (0, W - v.shape[0]))[None, :]

        qkvw_s, wo_s, w1_s, w2_s, bias_s = [], [], [], [], []
        for blk in self.blocks:
            # fold the attention scale into q weights/bias (free, host-side).
            qkvw_s.append(jnp.concatenate(
                [blk["wq"] * scale, blk["wk"], blk["wv"]], axis=1))       # (C, 3C)
            wo_s.append(blk["wo"])
            w1_s.append(blk["w1"])
            w2_s.append(blk["w2"])
            qkvb = jnp.concatenate([blk["bq"] * scale, blk["bk"], blk["bv"]])
            bias_s.append(jnp.concatenate([
                padrow(blk["ln1_g"]), padrow(blk["ln1_b"]),
                padrow(blk["ln2_g"]), padrow(blk["ln2_b"]),
                padrow(blk["bo"]), padrow(blk["b2"]),
                padrow(qkvb), padrow(blk["b1"])], axis=0))                # (8, W)

        self.qkvw_s = jnp.stack(qkvw_s).astype(jnp.bfloat16)   # (depth, C, 3C)
        self.wo_s = jnp.stack(wo_s).astype(jnp.bfloat16)       # (depth, C, C)
        self.w1_s = jnp.stack(w1_s).astype(jnp.bfloat16)       # (depth, C, Dh)
        self.w2_s = jnp.stack(w2_s).astype(jnp.bfloat16)       # (depth, Dh, C)
        self.bias_s = jnp.stack(bias_s).astype(jnp.float32)    # (depth, 8, W)

        self.patch_w_bf16 = self.patch_w.astype(jnp.bfloat16)  # (patch_dim, C)
        self.norm_packed = jnp.stack([self.norm_g, self.norm_b], axis=0)   # (2, C)
        if self.global_pool:
            self.fc_norm_packed = jnp.stack([self.fc_norm_g, self.fc_norm_b], axis=0)

        # Token bias (Np, C): row0 = cls+pos0; rows i = patch_b+pos_i; pad rows 0.
        tb0 = (self.cls_token[0, 0] + self.pos_embed[0, 0])[None, :]
        tbi = self.patch_b[None, :] + self.pos_embed[0, 1:]
        pad = jnp.zeros((self.seq_pad - self.seq, C), jnp.float32)
        self.tok_bias = jnp.concatenate([tb0, tbi, pad], axis=0).astype(jnp.float32)

    # ---------------- wrapper-side layout prep (cheap XLA ops) ----------------
    def _prep_inputs(self, x):
        B, Cc, Hh, Ww = x.shape
        p = self.patch_size
        gh, gw = Hh // p, Ww // p
        # NCHW -> per-patch vectors ordered (C, ph, pw) to match conv-weight flattening.
        xp = (x.reshape(B, Cc, gh, p, gw, p)
                .transpose(0, 2, 4, 1, 3, 5)
                .reshape(B, gh * gw, Cc * p * p))
        # row 0 = cls slot (zeros), rows 1..num_patches = patches, rest = pad rows.
        xp = jnp.pad(xp, ((0, 0), (1, self.seq_pad - self.seq), (0, 0)))
        return xp.astype(jnp.bfloat16)          # bf16: halves the largest DMA

    # ---------------- fused pallas calls ----------------
    def _embed_norm(self, x, norm_packed, global_pool):
        B = x.shape[0]
        Np, C = self.seq_pad, self.embed_dim
        xp = self._prep_inputs(x)
        pd = xp.shape[-1]
        kernel = functools.partial(_vit_embed_kernel,
                                   num_patches=self.num_patches,
                                   global_pool=global_pool)
        if global_pool:
            out_shape = jax.ShapeDtypeStruct((B, 8, C), jnp.float32)
            out_spec = pl.BlockSpec((1, 8, C), lambda b: (b, 0, 0))
        else:
            out_shape = jax.ShapeDtypeStruct((B, Np, C), jnp.float32)
            out_spec = pl.BlockSpec((1, Np, C), lambda b: (b, 0, 0))
        out = pl.pallas_call(
            kernel,
            out_shape=out_shape,
            grid=(B,),
            in_specs=[
                pl.BlockSpec((1, Np, pd), lambda b: (b, 0, 0)),
                pl.BlockSpec((Np, C), lambda b: (0, 0)),
                pl.BlockSpec((pd, C), lambda b: (0, 0)),
                pl.BlockSpec((2, C), lambda b: (0, 0)),
            ],
            out_specs=out_spec,
            compiler_params=pltpu.CompilerParams(
                dimension_semantics=("parallel",),
                vmem_limit_bytes=32 * 1024 * 1024),
        )(xp, self.tok_bias, self.patch_w_bf16, norm_packed)
        if global_pool:
            return out[:, 0, :]                 # (B, C)
        return out                              # (B, Np, C)

    def _full_forward(self, x):
        B = x.shape[0]
        N, Np, C = self.seq, self.seq_pad, self.embed_dim
        Dh = self.mlp_hidden
        xp = self._prep_inputs(x)
        pd = xp.shape[-1]
        kernel = functools.partial(
            _vit_blocks_kernel, num_heads=self.num_heads, head_dim=self.head_dim,
            mlp_hidden=Dh, seq=N)
        out = pl.pallas_call(
            kernel,
            out_shape=jax.ShapeDtypeStruct((B, 2, Np, C), jnp.float32),
            grid=(B, self.depth),
            in_specs=[
                pl.BlockSpec((1, Np, pd), lambda b, d: (b, 0, 0)),          # xp
                pl.BlockSpec((Np, C), lambda b, d: (0, 0)),                 # tok bias
                pl.BlockSpec((pd, C), lambda b, d: (0, 0)),                 # patch W
                pl.BlockSpec((1, C, 3 * C), lambda b, d: (d, 0, 0)),        # qkv W
                pl.BlockSpec((1, C, C), lambda b, d: (d, 0, 0)),            # proj W
                pl.BlockSpec((1, C, Dh), lambda b, d: (d, 0, 0)),           # fc1 W
                pl.BlockSpec((1, Dh, C), lambda b, d: (d, 0, 0)),           # fc2 W
                pl.BlockSpec((1, 8, self.bias_w), lambda b, d: (d, 0, 0)),  # bias slab
                pl.BlockSpec((2, C), lambda b, d: (0, 0)),                  # final norm
            ],
            out_specs=pl.BlockSpec((1, 2, Np, C), lambda b, d: (b, 0, 0, 0)),
            scratch_shapes=[pltpu.VMEM((Np, C), jnp.float32)],   # carried activation
            compiler_params=pltpu.CompilerParams(
                dimension_semantics=("parallel", "arbitrary"),
                vmem_limit_bytes=32 * 1024 * 1024),
        )(xp, self.tok_bias, self.patch_w_bf16,
          self.qkvw_s, self.wo_s, self.w1_s, self.w2_s,
          self.bias_s, self.norm_packed)
        blocks_f = out[:, 0, :N, :]
        init_f = out[:, 1, :N, :]
        return blocks_f, init_f

    # ---------------- forward paths (mirroring the PyTorch module) ----------------
    def forward_train(self, x):
        if self.global_pool:
            # mean over patch tokens (cls excluded) + fc_norm, inside the kernel.
            return self._embed_norm(x, self.fc_norm_packed, True)       # (B, C)
        normed = self._embed_norm(x, self.norm_packed, False)           # (B, Np, C)
        return normed[:, 0, :]                                          # cls token

    def forward_test(self, x, use_init_ptm=False):
        features = []
        if use_init_ptm:
            blocks_f, init_f = self._full_forward(x)    # one fused pallas_call
            features.append(blocks_f)
            features.append(init_f)
        else:
            normed = self._embed_norm(x, self.norm_packed, False)
            features.append(normed[:, :self.seq, :])
        return features

    def forward(self, x, test=False, use_init_ptm=False):
        if not test:
            output = self.forward_train(x)
        else:
            feats = self.forward_test(x, use_init_ptm)
            output = jnp.concatenate([f[:, 0, :] for f in feats], axis=1)
        return {"fmaps": None, "features_map": None, "features": output}


# --------------------------------------------------------------------------

if __name__ == "__main__":
    key = jax.random.PRNGKey(0)
    pkey, xkey = jax.random.split(key)

    model = VisionTransformerPallas(
        pkey, img_size=16, patch_size=4, in_chans=3,
        embed_dim=32, depth=2, num_heads=4, mlp_ratio=4.0, global_pool=False)

    x = jax.random.normal(xkey, (2, 3, 16, 16), dtype=jnp.float32)

    fwd_train = jax.jit(lambda inp: model.forward(inp)["features"])
    fwd_test = jax.jit(
        lambda inp: model.forward(inp, test=True, use_init_ptm=True)["features"])

    feat_train = fwd_train(x)            # embed-only fused kernel
    feat_test = fwd_test(x)              # fully fused embed+blocks+norm kernel
    jax.block_until_ready(feat_train)
    jax.block_until_ready(feat_test)

    assert feat_train.shape == (2, 32)
    assert feat_test.shape == (2, 64)
    assert bool(jnp.all(jnp.isfinite(feat_train)))
    assert bool(jnp.all(jnp.isfinite(feat_test)))

    print("KERNEL_OK")
</pallas_src>

<mosaic_0001>
module attributes {stable_mosaic.version = 11 : i64} {
  func.func @_vit_embed_kernel(%arg0: i32, %arg1: memref<1x24x48xbf16, #tpu.memory_space<vmem>>, %arg2: memref<24x32xf32, #tpu.memory_space<vmem>>, %arg3: memref<48x32xbf16, #tpu.memory_space<vmem>>, %arg4: memref<2x32xf32, #tpu.memory_space<vmem>>, %arg5: memref<1x24x32xf32, #tpu.memory_space<vmem>>) attributes {dimension_semantics = [#tpu.dimension_semantics<parallel>], iteration_bounds = array<i64: 2>, scalar_prefetch = 0 : i64, scratch_operands = 0 : i64, tpu.core_type = #tpu.core_type<tc>, window_params = [{transform_indices = @transform_0, window_bounds = array<i64: 1, 24, 48>}, {pipeline_mode = #tpu.pipeline_mode<synchronous>, transform_indices = @transform_1, window_bounds = array<i64: 24, 32>}, {pipeline_mode = #tpu.pipeline_mode<synchronous>, transform_indices = @transform_2, window_bounds = array<i64: 48, 32>}, {pipeline_mode = #tpu.pipeline_mode<synchronous>, transform_indices = @transform_3, window_bounds = array<i64: 2, 32>}, {transform_indices = @transform_4, window_bounds = array<i64: 1, 24, 32>}]} {
    %c0 = arith.constant 0 : index
    %c0_0 = arith.constant 0 : index
    %c0_1 = arith.constant 0 : index
    %0 = vector.load %arg1[%c0, %c0_0, %c0_1] : memref<1x24x48xbf16, #tpu.memory_space<vmem>>, vector<1x24x48xbf16>
    %1 = vector.shape_cast %0 : vector<1x24x48xbf16> to vector<24x48xbf16>
    %c0_2 = arith.constant 0 : index
    %c0_3 = arith.constant 0 : index
    %2 = vector.load %arg3[%c0_2, %c0_3] : memref<48x32xbf16, #tpu.memory_space<vmem>>, vector<48x32xbf16>
    %cst = arith.constant dense<0.000000e+00> : vector<24x32xf32>
    %3 = tpu.matmul %1, %2, %cst {dimension_numbers = #tpu.dot_dimension_numbers<[1], [0], [0], [1], [0, 0, 1, 1], [], []>} : vector<24x48xbf16>, vector<48x32xbf16>, vector<24x32xf32> -> vector<24x32xf32>
    %c0_4 = arith.constant 0 : index
    %c0_5 = arith.constant 0 : index
    %4 = vector.load %arg2[%c0_4, %c0_5] : memref<24x32xf32, #tpu.memory_space<vmem>>, vector<24x32xf32>
    %5 = arith.addf %3, %4 : vector<24x32xf32>
    %c0_6 = arith.constant 0 : index
    %c0_7 = arith.constant 0 : index
    %6 = vector.load %arg4[%c0_6, %c0_7] : memref<2x32xf32, #tpu.memory_space<vmem>>, vector<2x32xf32>
    %7 = vector.extract_strided_slice %6 {offsets = [0, 0], sizes = [1, 32], strides = [1, 1]} : vector<2x32xf32> to vector<1x32xf32>
    %8 = vector.extract_strided_slice %6 {offsets = [1, 0], sizes = [1, 32], strides = [1, 1]} : vector<2x32xf32> to vector<1x32xf32>
    %cst_8 = arith.constant dense<0.000000e+00> : vector<24xf32>
    %9 = vector.multi_reduction <add>, %5, %cst_8 [1] : vector<24x32xf32> to vector<24xf32>
    %10 = vector.shape_cast %9 : vector<24xf32> to vector<24x1xf32>
    %cst_9 = arith.constant 3.200000e+01 : f32
    %11 = vector.broadcast %cst_9 : f32 to vector<24x1xf32>
    %12 = arith.divf %10, %11 : vector<24x1xf32>
    %13 = vector.broadcast %12 : vector<24x1xf32> to vector<24x32xf32>
    %14 = arith.subf %5, %13 : vector<24x32xf32>
    %15 = arith.mulf %14, %14 : vector<24x32xf32>
    %cst_10 = arith.constant dense<0.000000e+00> : vector<24xf32>
    %16 = vector.multi_reduction <add>, %15, %cst_10 [1] : vector<24x32xf32> to vector<24xf32>
    %17 = vector.shape_cast %16 : vector<24xf32> to vector<24x1xf32>
    %cst_11 = arith.constant 3.200000e+01 : f32
    %18 = vector.broadcast %cst_11 : f32 to vector<24x1xf32>
    %19 = arith.divf %17, %18 : vector<24x1xf32>
    %20 = vector.broadcast %12 : vector<24x1xf32> to vector<24x32xf32>
    %21 = arith.subf %5, %20 : vector<24x32xf32>
    %cst_12 = arith.constant 9.99999997E-7 : f32
    %22 = vector.broadcast %cst_12 : f32 to vector<24x1xf32>
    %23 = arith.addf %19, %22 : vector<24x1xf32>
    %24 = math.rsqrt %23 : vector<24x1xf32>
    %25 = vector.broadcast %24 : vector<24x1xf32> to vector<24x32xf32>
    %26 = arith.mulf %21, %25 : vector<24x32xf32>
    %27 = vector.broadcast %7 : vector<1x32xf32> to vector<24x32xf32>
    %28 = arith.mulf %26, %27 : vector<24x32xf32>
    %29 = vector.broadcast %8 : vector<1x32xf32> to vector<24x32xf32>
    %30 = arith.addf %28, %29 : vector<24x32xf32>
    %c0_13 = arith.constant 0 : index
    %c0_14 = arith.constant 0 : index
    %c0_15 = arith.constant 0 : index
    %31 = vector.load %arg5[%c0_13, %c0_14, %c0_15] : memref<1x24x32xf32, #tpu.memory_space<vmem>>, vector<1x24x32xf32>
    %32 = vector.shape_cast %31 : vector<1x24x32xf32> to vector<24x32xf32>
    %33 = vector.shape_cast %30 : vector<24x32xf32> to vector<1x24x32xf32>
    tpu.vector_store %arg5[%c0_13, %c0_14, %c0_15], %33 {strides = array<i32>} : memref<1x24x32xf32, #tpu.memory_space<vmem>>, vector<1x24x32xf32>,
    return
  }
  func.func @transform_0(%arg0: i32) -> (i32, i32, i32) {
    %c0_i32 = arith.constant 0 : i32
    %c0_i32_0 = arith.constant 0 : i32
    %c0_i32_1 = arith.constant 0 : i32
    return %arg0, %c0_i32, %c0_i32_0 : i32, i32, i32
  }
  func.func @transform_1(%arg0: i32) -> (i32, i32) {
    %c0_i32 = arith.constant 0 : i32
    %c0_i32_0 = arith.constant 0 : i32
    %c0_i32_1 = arith.constant 0 : i32
    return %c0_i32, %c0_i32_0 : i32, i32
  }
  func.func @transform_2(%arg0: i32) -> (i32, i32) {
    %c0_i32 = arith.constant 0 : i32
    %c0_i32_0 = arith.constant 0 : i32
    %c0_i32_1 = arith.constant 0 : i32
    return %c0_i32, %c0_i32_0 : i32, i32
  }
  func.func @transform_3(%arg0: i32) -> (i32, i32) {
    %c0_i32 = arith.constant 0 : i32
    %c0_i32_0 = arith.constant 0 : i32
    %c0_i32_1 = arith.constant 0 : i32
    return %c0_i32, %c0_i32_0 : i32, i32
  }
  func.func @transform_4(%arg0: i32) -> (i32, i32, i32) {
    %c0_i32 = arith.constant 0 : i32
    %c0_i32_0 = arith.constant 0 : i32
    %c0_i32_1 = arith.constant 0 : i32
    return %arg0, %c0_i32, %c0_i32_0 : i32, i32, i32
  }
}

</mosaic_0001>

<llo_original>
// kernel: _lambda_.1
$region0: #{_lambda_.1}
  #allocation0 [shape = 'u32[]', space=smem, size = 0x4, offset = 0x4, fixed_abs, tag = 'smem constant byte address 0x4 - core index']
  #allocation1 [shape = 'u32[72,128]{1,0:T(1,128)}', space=vmem, size = 0x9000, scoped, tag = 'internal scratch']
  %s0 = inlined_call_operand.vmem [shape: bf16[2,24,48], index: 0, kind: input, shape index: {}]
  %s1 = inlined_call_operand.vmem [shape: f32[24,32], index: 1, kind: input, shape index: {}]
  %s2 = inlined_call_operand.vmem [shape: bf16[48,32], index: 2, kind: input, shape index: {}]
  %s3 = inlined_call_operand.vmem [shape: f32[2,32], index: 3, kind: input, shape index: {}]
  %s4 = inlined_call_operand.vmem [shape: f32[2,24,32], index: 4, kind: output, shape index: {}]
  %s5 = sld [smem:[#allocation0]]
  $region49: #{_lambda_.1} parent=0
    _
  %s7 = ssub.s32 1, %s5
  %s8 = scalar_select 0, %s7, %s5
  loop: start=0, step=1, limit=4
  $region2: #{_lambda_.1} parent=0 // loop_pre_header
    _
  $region3: #{_lambda_.1} parent=0 // loop_header
    %s10 = sphi 0, %s14
    %p11 = scmp.ge.s32.totalorder %s10, 4
    %s20 = sphi 0, %s22
    %s23 = sphi 0, %s20
    %s24 = sphi 0, %s23
    %s40 = sphi 0, %s24
    %s44 = sphi 0, %s44
    %s46 = sphi 0, %s44
    %s47 = sphi 0, %s46
    %s61 = sphi 0, %s47
    %s65 = sphi 0, %s65
    %s67 = sphi 0, %s65
    %s68 = sphi 0, %s67
    %s82 = sphi 0, %s68
    %s86 = sphi 0, %s86
    %s88 = sphi 0, %s86
    %s89 = sphi 0, %s88
    %s103 = sphi 0, %s89
    %s109 = sphi 0, %s111
    %s112 = sphi 0, %s109
    %s113 = sphi 0, %s112
    %s129 = sphi 0, %s113
  $region4: #{_lambda_.1} parent=0 // loop_header_branch
    %13 = sbr.rel (%p11) target = $region8
  $region5: #{_lambda_.1} parent=0 // loop_body
    %s15 = ssub.s32 %s10, 1
    %s16 = ssub.s32 %s10, 2
    %s17 = sadd.s32 %s10, 1
    %s18 = ssub.s32 %s10, %s17
    %p19 = scmp.eq.s32.totalorder %s18, 0
    %s21 = sadd.s32 %s20, 1
    %s22 = scalar_select %p19, %s20, %s21
    %p25 = pneg %p19
    %p26 = scmp.eq.s32.totalorder %s10, 1
    %p27 = por %p25, %p26
    %p28 = scmp.ne.s32.totalorder %s20, %s23
    %p29 = scmp.eq.s32.totalorder %s10, 0
    %p30 = por %p28, %p29
    %p31 = scmp.ne.s32.totalorder %s20, %s23
    %p32 = scmp.eq.s32.totalorder %s15, 1
    %p33 = por %p31, %p32
    %p34 = scmp.ne.s32.totalorder %s23, %s24
    %p35 = scmp.eq.s32.totalorder %s15, 0
    %p36 = por %p34, %p35
    %p37 = scmp.ne.s32.totalorder %s23, %s24
    %p38 = scmp.eq.s32.totalorder %s16, 1
    %p39 = por %p37, %p38
    %p41 = scmp.ne.s32.totalorder %s24, %s40
    %p42 = scmp.eq.s32.totalorder %s16, 0
    %p43 = por %p41, %p42
    %s45 = sadd.s32 %s44, 1
    %p48 = scmp.eq.s32.totalorder %s10, 1
    %p49 = scmp.ne.s32.totalorder %s44, %s46
    %p50 = scmp.eq.s32.totalorder %s10, 0
    %p51 = por %p49, %p50
    %p52 = scmp.ne.s32.totalorder %s44, %s46
    %p53 = scmp.eq.s32.totalorder %s15, 1
    %p54 = por %p52, %p53
    %p55 = scmp.ne.s32.totalorder %s46, %s47
    %p56 = scmp.eq.s32.totalorder %s15, 0
    %p57 = por %p55, %p56
    %p58 = scmp.ne.s32.totalorder %s46, %s47
    %p59 = scmp.eq.s32.totalorder %s16, 1
    %p60 = por %p58, %p59
    %p62 = scmp.ne.s32.totalorder %s47, %s61
    %p63 = scmp.eq.s32.totalorder %s16, 0
    %p64 = por %p62, %p63
    %s66 = sadd.s32 %s65, 1
    %p69 = scmp.eq.s32.totalorder %s10, 1
    %p70 = scmp.ne.s32.totalorder %s65, %s67
    %p71 = scmp.eq.s32.totalorder %s10, 0
    %p72 = por %p70, %p71
    %p73 = scmp.ne.s32.totalorder %s65, %s67
    %p74 = scmp.eq.s32.totalorder %s15, 1
    %p75 = por %p73, %p74
    %p76 = scmp.ne.s32.totalorder %s67, %s68
    %p77 = scmp.eq.s32.totalorder %s15, 0
    %p78 = por %p76, %p77
    %p79 = scmp.ne.s32.totalorder %s67, %s68
    %p80 = scmp.eq.s32.totalorder %s16, 1
    %p81 = por %p79, %p80
    %p83 = scmp.ne.s32.totalorder %s68, %s82
    %p84 = scmp.eq.s32.totalorder %s16, 0
    %p85 = por %p83, %p84
    %s87 = sadd.s32 %s86, 1
    %p90 = scmp.eq.s32.totalorder %s10, 1
    %p91 = scmp.ne.s32.totalorder %s86, %s88
    %p92 = scmp.eq.s32.totalorder %s10, 0
    %p93 = por %p91, %p92
    %p94 = scmp.ne.s32.totalorder %s86, %s88
    %p95 = scmp.eq.s32.totalorder %s15, 1
    %p96 = por %p94, %p95
    %p97 = scmp.ne.s32.totalorder %s88, %s89
    %p98 = scmp.eq.s32.totalorder %s15, 0
    %p99 = por %p97, %p98
    %p100 = scmp.ne.s32.totalorder %s88, %s89
    %p101 = scmp.eq.s32.totalorder %s16, 1
    %p102 = por %p100, %p101
    %p104 = scmp.ne.s32.totalorder %s89, %s103
    %p105 = scmp.eq.s32.totalorder %s16, 0
    %p106 = por %p104, %p105
    %s107 = ssub.s32 %s10, %s17
    %p108 = scmp.eq.s32.totalorder %s107, 0
    %s110 = sadd.s32 %s109, 1
    %s111 = scalar_select %p108, %s109, %s110
    %p114 = pneg %p108
    %p115 = scmp.eq.s32.totalorder %s10, 1
    %p116 = por %p114, %p115
    %p117 = scmp.ne.s32.totalorder %s109, %s112
    %p118 = scmp.eq.s32.totalorder %s10, 0
    %p119 = por %p117, %p118
    %p120 = scmp.ne.s32.totalorder %s109, %s112
    %p121 = scmp.eq.s32.totalorder %s15, 1
    %p122 = por %p120, %p121
    %p123 = scmp.ne.s32.totalorder %s112, %s113
    %p124 = scmp.eq.s32.totalorder %s15, 0
    %p125 = por %p123, %p124
    %p126 = scmp.ne.s32.totalorder %s112, %s113
    %p127 = scmp.eq.s32.totalorder %s16, 1
    %p128 = por %p126, %p127
    %p130 = scmp.ne.s32.totalorder %s113, %s129
    %p131 = scmp.eq.s32.totalorder %s16, 0
    %p132 = por %p130, %p131
    %p133 = scmp.le.s32.totalorder 1, %s10
    %p134 = scmp.lt.s32.totalorder %s10, 3
    %p135 = pnand %p133, %p134
    %p136 = pneg %p135
    // Predicated region
    $region9: #{_lambda_.1} parent=5 // pred_check
      _
    $region10: #{_lambda_.1} parent=5 // pred_check_branch
      %138 = sbr.rel (%p135) target = $region12
    $region11: #{_lambda_.1} parent=5 // pred_region
      %s139 = ssub.s32 %s10, 1
      // Predicated region
      $region13: #{_lambda_.1} parent=11 // pred_check
        %p140 = pneg %p57
      $region14: #{_lambda_.1} parent=11 // pred_check_branch
        %142 = sbr.rel (%p140) target = $region16
      $region15: #{_lambda_.1} parent=11 // pred_region
        _
      $region16: #{_lambda_.1} parent=11 // pred_fallthru
        _
      // Predicated region
      $region17: #{_lambda_.1} parent=11 // pred_check
        %p143 = pneg %p78
      $region18: #{_lambda_.1} parent=11 // pred_check_branch
        %145 = sbr.rel (%p143) target = $region20
      $region19: #{_lambda_.1} parent=11 // pred_region
        _
      $region20: #{_lambda_.1} parent=11 // pred_fallthru
        _
      // Predicated region
      $region21: #{_lambda_.1} parent=11 // pred_check
        %p146 = pneg %p99
      $region22: #{_lambda_.1} parent=11 // pred_check_branch
        %148 = sbr.rel (%p146) target = $region24
      $region23: #{_lambda_.1} parent=11 // pred_region
        _
      $region24: #{_lambda_.1} parent=11 // pred_fallthru
        _
    $region12: #{_lambda_.1} parent=5 // pred_fallthru
      _
    %p149 = scmp.lt.s32.totalorder %s10, 2
    // Predicated region
    $region25: #{_lambda_.1} parent=5 // pred_check
      %p150 = pneg %p149
    $region26: #{_lambda_.1} parent=5 // pred_check_branch
      %152 = sbr.rel (%p150) target = $region28
    $region27: #{_lambda_.1} parent=5 // pred_region
      // Predicated region
      $region29: #{_lambda_.1} parent=27 // pred_check
        %p153 = pneg %p30
      $region30: #{_lambda_.1} parent=27 // pred_check_branch
        %155 = sbr.rel (%p153) target = $region32
      $region31: #{_lambda_.1} parent=27 // pred_region
        %p156 = scmp.lt.s32.totalorder %s10, 1
        %s157 = scalar_select %p156, %s10, 1
        %s158 = smul.addr %s157, 3
        %s159 = smul.addr %s158, 4
        %s160 = scalar_lea.vmem %s0, %s159
      $region32: #{_lambda_.1} parent=27 // pred_fallthru
        _
    $region28: #{_lambda_.1} parent=5 // pred_fallthru
      _
    %p161 = scmp.le.s32.totalorder 1, %s10
    %p162 = scmp.lt.s32.totalorder %s10, 3
    %p163 = pnand %p161, %p162
    %p164 = pneg %p163
    // Predicated region
    $region33: #{_lambda_.1} parent=5 // pred_check
      _
    $region34: #{_lambda_.1} parent=5 // pred_check_branch
      %166 = sbr.rel (%p163) target = $region36
    $region35: #{_lambda_.1} parent=5 // pred_region
      %s167 = ssub.s32 %s10, 1
      %p168 = scmp.lt.s32.totalorder %s15, 1
      %s169 = scalar_select %p168, %s15, 1
      %s170 = smul.addr %s169, 3
      %s171 = smul.addr %s170, 4
      %s172 = scalar_lea.vmem %s0, %s171
      %p173 = pneg %p36
      %p174 = pneg %p33
      %p175 = pneg %p57
      %p176 = pneg %p54
      %p177 = pneg %p78
      %p178 = pneg %p75
      %p179 = pneg %p99
      %p180 = pneg %p96
      %p181 = pneg %p125
      %p182 = pneg %p122
      %p183 = scmp.lt.s32.totalorder %s15, 1
      %s184 = scalar_select %p183, %s15, 1
      %s185 = smul.addr %s184, 3
      %s186 = smul.addr %s185, 8
      %s187 = scalar_lea.vmem %s4, %s186
      %p188 = scmp.lt.s32.totalorder %s15, 1
      %s189 = scalar_select %p188, %s15, 1
      %s190 = smul.addr %s189, 3
      %s191 = smul.addr %s190, 4
      %s192 = scalar_lea.vmem %s0, %s191
      %p193 = scmp.lt.s32.totalorder %s15, 1
      %s194 = scalar_select %p193, %s15, 1
      %s195 = smul.addr %s194, 3
      %s196 = smul.addr %s195, 8
      %s197 = scalar_lea.vmem %s4, %s196
      %v199 = vld [vmem:[%s192] sm:$0xf]
      %v200 = vld [vmem:[%s192 + $0x4] sm:$0xf]
      %v201 = vld [vmem:[%s192 + $0x8] sm:$0xf]
      %v202 = vld [vmem:[%s2] sm:$0xf]
      %v203 = vld [vmem:[%s2 + $0x4] sm:$0xf]
      %v204 = vld [vmem:[%s2 + $0x8] sm:$0xf]
      %v205 = vld [vmem:[%s2 + $0xc] sm:$0xf]
      %v206 = vld [vmem:[%s2 + $0x10] sm:$0xf]
      %v207 = vld [vmem:[%s2 + $0x14] sm:$0xf]
      %v208 = vld [vmem:[%s1] sm:$0xff]
      %v209 = vld [vmem:[%s1 + $0x8] sm:$0xff]
      %v210 = vld [vmem:[%s1 + $0x10] sm:$0xff]
      %v214 = vunpack.c.l.b16 %v199
      %v215 = vunpack.c.l.b16 %v200
      %v216 = vunpack.c.l.b16 %v201
      %v217 = vpack.c.b16 %v215, %v214
      %v218 = vpack.c.b16 %v216, %v216
      %v225 = vunpack.c.l.b16 %v202
      %v226 = vunpack.c.l.b16 %v203
      %v227 = vunpack.c.l.b16 %v204
      %v228 = vunpack.c.l.b16 %v205
      %v229 = vunpack.c.l.b16 %v206
      %v230 = vunpack.c.l.b16 %v207
      %v231 = vpack.c.b16 %v226, %v225
      %v232 = vpack.c.b16 %v228, %v227
      %v233 = vpack.c.b16 %v230, %v229
      %vm237 = vcmask 392192
      %v239 = vsel %vm237, %v217, 0
      %v242 = vsel %vm237, %v218, 0
      %244 = vmatpush.bf16.msra.mxu0 0
      %245 = vmatpush.bf16.msra.mxu0 0
      %246 = vmatpush.bf16.msra.mxu0 0
      %247 = vmatpush.bf16.msra.mxu0 0
      %248 = vmatpush.bf16.msra.mxu0 0
      %249 = vmatpush.bf16.msra.mxu0 %v233
      %250 = vmatpush.bf16.msra.mxu0 %v232
      %251 = vmatpush.bf16.msra.mxu0 %v231
      %252 = vmatmul.bf16.gmra.mxu0 %v239
      %v253 = vpop.f32.mrf.mxu0
      %v254 = vadd.f32 %v208, %v253
      %v255 = vpop.f32.mrf.mxu0
      %v256 = vadd.f32 %v209, %v255
      %257 = vmatmul.bf16.gmra.mxu0 %v242
      %v258 = vpop.f32.mrf.mxu0
      %v259 = vadd.f32 %v210, %v258
      %v260 = vpop.f32.mrf.mxu0
      %261 = vdwg.mxu0
      %v262 = vld [vmem:[%s3] sm:$0x3]
      %vm263 = vcmask 261120
      %v264 = vsel %vm263, %v254, 0.0
      %265 = vadd.xlane.f32.xlu0 %v264
      %v266 = vpop.xlane.xlu0 %265
      %v267 = vsel %vm263, %v256, 0.0
      %268 = vadd.xlane.f32.xlu0 %v267
      %v269 = vpop.xlane.xlu0 %268
      %v270 = vsel %vm263, %v259, 0.0
      %271 = vadd.xlane.f32.xlu0 %v270
      %v272 = vpop.xlane.xlu0 %271
      %v273 = vrcp.pop 32.0
      %v274 = vmul.f32 32.0, %v273
      %v275 = vsub.f32 1.0, %v274
      %v276 = vmul.f32 %v273, %v275
      %v277 = vadd.f32 %v273, %v276
      %vm278 = vweird.f32 %v273
      %v279 = vsel %vm278, %v273, %v277
      %v280 = vmul.f32 %v266, %v279
      %v281 = vmul.f32 %v269, %v279
      %v282 = vmul.f32 %v272, %v279
      %v283 = vsub.f32 %v254, %v280
      %v284 = vsub.f32 %v256, %v281
      %v285 = vsub.f32 %v259, %v282
      %v286 = vmul.f32 %v283, %v283
      %v287 = vmul.f32 %v284, %v284
      %v288 = vmul.f32 %v285, %v285
      %v289 = vsel %vm263, %v286, 0.0
      %290 = vadd.xlane.f32.xlu0 %v289
      %v291 = vpop.xlane.xlu0 %290
      %v292 = vsel %vm263, %v287, 0.0
      %293 = vadd.xlane.f32.xlu0 %v292
      %v294 = vpop.xlane.xlu0 %293
      %v295 = vsel %vm263, %v288, 0.0
      %296 = vadd.xlane.f32.xlu0 %v295
      %v297 = vpop.xlane.xlu0 %296
      %v298 = vmul.f32 %v291, %v279
      %v299 = vmul.f32 %v294, %v279
      %v300 = vmul.f32 %v297, %v279
      %v301 = vadd.f32 %v298, 1e-06
      %v302 = vadd.f32 %v299, 1e-06
      %v303 = vadd.f32 %v300, 1e-06
      %v304 = vrsqrt.pop %v301
      %v305 = vmul.f32 %v304, %v301
      %v306 = vmul.f32 %v305, %v304
      %v307 = vmul.f32 0.5, %v306
      %v308 = vsub.f32 1.5, %v307
      %v309 = vmul.f32 %v304, %v308
      %vm310 = vweird.f32 %v301
      %vm311 = vweird.f32 %v304
      %vm312 = vmor %vm310, %vm311
      %v313 = vsel %vm312, %v304, %v309
      %v314 = vrsqrt.pop %v302
      %v315 = vmul.f32 %v314, %v302
      %v316 = vmul.f32 %v315, %v314
      %v317 = vmul.f32 0.5, %v316
      %v318 = vsub.f32 1.5, %v317
      %v319 = vmul.f32 %v314, %v318
      %vm320 = vweird.f32 %v302
      %vm321 = vweird.f32 %v314
      %vm322 = vmor %vm320, %vm321
      %v323 = vsel %vm322, %v314, %v319
      %v324 = vrsqrt.pop %v303
      %v325 = vmul.f32 %v324, %v303
      %v326 = vmul.f32 %v325, %v324
      %v327 = vmul.f32 0.5, %v326
      %v328 = vsub.f32 1.5, %v327
      %v329 = vmul.f32 %v324, %v328
      %vm330 = vweird.f32 %v303
      %vm331 = vweird.f32 %v324
      %vm332 = vmor %vm330, %vm331
      %v333 = vsel %vm332, %v324, %v329
      %v334 = vmul.f32 %v283, %v313
      %v335 = vmul.f32 %v284, %v323
      %v336 = vmul.f32 %v285, %v333
      %v337 = vperm.slane %v262, 0
      %v338 = vmul.f32 %v334, %v337
      %v339 = vmul.f32 %v335, %v337
      %v340 = vmul.f32 %v336, %v337
      %v341 = vperm.slane %v262, 1
      %v342 = vadd.f32 %v338, %v341
      %v343 = vadd.f32 %v339, %v341
      %v344 = vadd.f32 %v340, %v341
      %345 = vst.msk [vmem:[%s197] sm:$0xff] %vm263, %v342
      %346 = vst.msk [vmem:[%s197 + $0x8] sm:$0xff] %vm263, %v343
      %347 = vst.msk [vmem:[%s197 + $0x10] sm:$0xff] %vm263, %v344
      %p348 = scmp.lt.s32.totalorder %s15, 1
      %s349 = scalar_select %p348, %s15, 1
      %s350 = smul.addr %s349, 3
      %s351 = smul.addr %s350, 8
      %s352 = scalar_lea.vmem %s4, %s351
      // Predicated region
      $region37: #{_lambda_.1} parent=35 // pred_check
        %p353 = pneg %p122
      $region38: #{_lambda_.1} parent=35 // pred_check_branch
        %355 = sbr.rel (%p353) target = $region40
      $region39: #{_lambda_.1} parent=35 // pred_region
        _
      $region40: #{_lambda_.1} parent=35 // pred_fallthru
        _
    $region36: #{_lambda_.1} parent=5 // pred_fallthru
      _
    %p356 = scmp.le.s32.totalorder 2, %s10
    // Predicated region
    $region41: #{_lambda_.1} parent=5 // pred_check
      %p357 = pneg %p356
    $region42: #{_lambda_.1} parent=5 // pred_check_branch
      %359 = sbr.rel (%p357) target = $region44
    $region43: #{_lambda_.1} parent=5 // pred_region
      %s360 = ssub.s32 %s10, 2
      // Predicated region
      $region45: #{_lambda_.1} parent=43 // pred_check
        %p361 = pneg %p128
      $region46: #{_lambda_.1} parent=43 // pred_check_branch
        %363 = sbr.rel (%p361) target = $region48
      $region47: #{_lambda_.1} parent=43 // pred_region
        %p364 = scmp.lt.s32.totalorder %s16, 1
        %s365 = scalar_select %p364, %s16, 1
        %s366 = smul.addr %s365, 3
        %s367 = smul.addr %s366, 8
        %s368 = scalar_lea.vmem %s4, %s367
      $region48: #{_lambda_.1} parent=43 // pred_fallthru
        _
    $region44: #{_lambda_.1} parent=5 // pred_fallthru
      _
  $region6: #{_lambda_.1} parent=0 // loop_footer
    %s14 = sadd.s32 1, %s10
  $region7: #{_lambda_.1} parent=0 // loop_footer_branch
    %9 = sbr.rel target = $region3
  $region8: #{_lambda_.1} parent=0 // loop_exit
    _

</llo_original>
